<compile_context>
chip_gen: v5e
topology: v5e:2x2
jax: 0.10.0
libtpu: 0.0.40
codegen_flags: <defaults>
</compile_context>

<pallas_src>
import jax
import jax.numpy as jnp
from jax.experimental import pallas as pl
from jax.experimental.pallas import tpu as pltpu


def _round_up(x: int, m: int) -> int:
    return ((x + m - 1) // m) * m


def _cdiv(a: int, b: int) -> int:
    return -(-a // b)


def _neus_alpha_kernel(scalars_ref, tc_ref, sdf_ref, deltas_ref, alpha_ref):
    # scalars_ref (SMEM): [inv_s, cos_anneal_ratio, 1 - cos_anneal_ratio]
    inv_s = scalars_ref[0]
    anneal = scalars_ref[1]
    one_minus_anneal = scalars_ref[2]

    # Upcast after the DMA so HBM traffic stays at the producer's dtype.
    true_cos = tc_ref[...].astype(jnp.float32)
    sdf = sdf_ref[...].astype(jnp.float32)
    deltas = deltas_ref[...].astype(jnp.float32)

    # iter_cos = -(relu(-tc*0.5 + 0.5)*(1-a) + relu(-tc)*a)
    iter_cos = -(jnp.maximum(-true_cos * 0.5 + 0.5, 0.0) * one_minus_anneal
                 + jnp.maximum(-true_cos, 0.0) * anneal)

    half = iter_cos * deltas * 0.5
    prev_cdf = jax.nn.sigmoid((sdf - half) * inv_s)   # exp on the EUP
    next_cdf = jax.nn.sigmoid((sdf + half) * inv_s)

    p = prev_cdf - next_cdf
    c = prev_cdf
    alpha = jnp.clip((p + 1e-5) / (c + 1e-5), 0.0, 1.0)
    alpha_ref[...] = alpha.astype(alpha_ref.dtype)


def neus_alpha(directions, gradients, sdf, deltas, variance_param,
               cos_anneal_ratio=1.0, tile_rows=None, lanes=None):
    """directions, gradients: [R, S, 3]; sdf, deltas: [R, S, 1] -> alpha [R, S]."""
    R, S, _ = directions.shape
    N = R * S

    # SingleVarianceNetwork.get_variance(): exp(variance * 10.0)  (host glue)
    inv_s = jnp.exp(jnp.asarray(variance_param, jnp.float32) * 10.0)
    anneal = jnp.float32(cos_anneal_ratio)
    scalars = jnp.stack([inv_s, anneal, jnp.float32(1.0) - anneal]).astype(jnp.float32)

    # true_cos in one fused XLA pass; f32 accumulation keeps parity for bf16.
    true_cos = jnp.einsum("rsc,rsc->rs", directions, gradients,
                          preferred_element_type=jnp.float32)
    sdf_2d = sdf[..., 0]
    deltas_2d = deltas[..., 0]
    out_dtype = jnp.result_type(directions.dtype, gradients.dtype,
                                sdf.dtype, deltas.dtype)

    # --- lane-dense flat slab: (R, S) -> (rows, LANES), LANES multiple of 128
    if lanes is None:
        lanes = next((l for l in (512, 1024, 2048, 256, 128) if N % l == 0), 512)
    pad_n = (-N) % lanes   # tail padding only when no lane width divides R*S

    def to_slab(x):
        flat = x.reshape(-1)
        if pad_n:
            flat = jnp.pad(flat, (0, pad_n))
        return flat.reshape(-1, lanes)

    tc_slab = to_slab(true_cos)
    sdf_slab = to_slab(sdf_2d)
    dl_slab = to_slab(deltas_2d)
    rows = (N + pad_n) // lanes

    # --- tile selection (dtype-aware, VMEM-budgeted, >=4 steps when possible)
    itemsizes = [tc_slab.dtype.itemsize, sdf_slab.dtype.itemsize,
                 dl_slab.dtype.itemsize, jnp.dtype(out_dtype).itemsize]
    sublane = max(8, 32 // min(itemsizes))          # 8 f32 / 16 bf16 / 32 int8
    if tile_rows is None:
        per_row_db = 2 * lanes * sum(itemsizes)     # double-buffered bytes/row
        vmem_rows = max(sublane, (20 * 1024 * 1024) // per_row_db)
        tile_rows = min(512, vmem_rows)
        if rows >= 4 * 128:
            # Enough work: aim for >=4 grid steps (2 per v7x TensorCore) while
            # keeping blocks large; do not shrink tiles for small inputs.
            tile_rows = min(tile_rows, _round_up(_cdiv(rows, 4), sublane))
    if tile_rows >= rows:
        tile_rows = rows                            # single full-extent block
    else:
        tile_rows = _round_up(max(sublane, int(tile_rows)), sublane)

    grid = (_cdiv(rows, tile_rows),)                # ragged last block allowed

    elems = rows * lanes
    cost = pl.CostEstimate(
        flops=14 * elems,
        transcendentals=2 * elems,
        bytes_accessed=elems * sum(itemsizes),
    )

    out = pl.pallas_call(
        _neus_alpha_kernel,
        out_shape=jax.ShapeDtypeStruct((rows, lanes), out_dtype),
        grid_spec=pltpu.PrefetchScalarGridSpec(
            num_scalar_prefetch=0,
            grid=grid,
            in_specs=[
                pl.BlockSpec(memory_space=pltpu.SMEM),               # scalars
                pl.BlockSpec((tile_rows, lanes), lambda i: (i, 0)),  # true_cos
                pl.BlockSpec((tile_rows, lanes), lambda i: (i, 0)),  # sdf
                pl.BlockSpec((tile_rows, lanes), lambda i: (i, 0)),  # deltas
            ],
            out_specs=pl.BlockSpec((tile_rows, lanes), lambda i: (i, 0)),
        ),
        compiler_params=pltpu.CompilerParams(
            dimension_semantics=("parallel",),
            vmem_limit_bytes=32 * 1024 * 1024),
        cost_estimate=cost,
    )(scalars, tc_slab, sdf_slab, dl_slab)

    if pad_n:
        return out.reshape(-1)[:N].reshape(R, S)
    return out.reshape(R, S)


def _reference(directions, gradients, sdf, deltas, variance_param,
               cos_anneal_ratio=1.0):
    inv_s = jnp.exp(jnp.asarray(variance_param, jnp.float32) * 10.0)
    true_cos = jnp.sum(directions * gradients, axis=-1, keepdims=True)
    iter_cos = -(jax.nn.relu(-true_cos * 0.5 + 0.5) * (1.0 - cos_anneal_ratio)
                 + jax.nn.relu(-true_cos) * cos_anneal_ratio)
    est_next = sdf + iter_cos * deltas * 0.5
    est_prev = sdf - iter_cos * deltas * 0.5
    prev_cdf = jax.nn.sigmoid(est_prev * inv_s)
    next_cdf = jax.nn.sigmoid(est_next * inv_s)
    p = prev_cdf - next_cdf
    c = prev_cdf
    return jnp.clip((p + 1e-5) / (c + 1e-5), 0.0, 1.0)[..., 0]


def _make_inputs(key, R, S):
    k1, k2, k3, k4 = jax.random.split(key, 4)
    directions = jax.random.normal(k1, (R, S, 3), dtype=jnp.float32)
    directions = directions / jnp.linalg.norm(directions, axis=-1, keepdims=True)
    gradients = jax.random.normal(k2, (R, S, 3), dtype=jnp.float32)
    sdf = 0.1 * jax.random.normal(k3, (R, S, 1), dtype=jnp.float32)
    deltas = 0.01 + 0.01 * jax.random.uniform(k4, (R, S, 1), dtype=jnp.float32)
    return directions, gradients, sdf, deltas


if __name__ == "__main__":
    key = jax.random.PRNGKey(0)
    k_a, k_b, k_c = jax.random.split(key, 3)

    # Deterministic parameter init: SingleVarianceNetwork(init_val=s_init=0.3)
    variance_param = jnp.float32(0.3)

    # Case 1: lane-aligned (R*S multiple of 512 -> no padding), full anneal.
    R1, S1 = 64, 128
    d1, g1, s1, dl1 = _make_inputs(k_a, R1, S1)
    a1 = jax.block_until_ready(
        neus_alpha(d1, g1, s1, dl1, variance_param, cos_anneal_ratio=1.0))
    r1 = _reference(d1, g1, s1, dl1, variance_param, 1.0)
    assert a1.shape == (R1, S1)
    assert float(jnp.max(jnp.abs(a1 - r1))) < 1e-5

    # Case 2: ragged grid (rows=12, tile_rows=8 -> 2 steps, last block masked)
    # with partial anneal.
    R2, S2 = 48, 128
    d2, g2, s2, dl2 = _make_inputs(k_b, R2, S2)
    a2 = jax.block_until_ready(
        neus_alpha(d2, g2, s2, dl2, variance_param, cos_anneal_ratio=0.5,
                   tile_rows=8))
    r2 = _reference(d2, g2, s2, dl2, variance_param, 0.5)
    assert a2.shape == (R2, S2)
    assert float(jnp.max(jnp.abs(a2 - r2))) < 1e-5

    # Case 3: S not a multiple of 128 and R*S divides no lane width ->
    # exercises the flat tail-padding fallback path.
    R3, S3 = 37, 48
    d3, g3, s3, dl3 = _make_inputs(k_c, R3, S3)
    a3 = jax.block_until_ready(
        neus_alpha(d3, g3, s3, dl3, variance_param, cos_anneal_ratio=0.25))
    r3 = _reference(d3, g3, s3, dl3, variance_param, 0.25)
    assert a3.shape == (R3, S3)
    assert float(jnp.max(jnp.abs(a3 - r3))) < 1e-5

    # TODO(synk): SingleVarianceNetwork param groups and the cos-anneal
    # training callback are host-side training plumbing, not kernel work.

    print("KERNEL_OK")
</pallas_src>

<mosaic_0001>
module attributes {stable_mosaic.version = 11 : i64} {
  func.func @_neus_alpha_kernel(%arg0: i32, %arg1: memref<3xf32, #tpu.memory_space<smem>>, %arg2: memref<16x512xf32, #tpu.memory_space<vmem>>, %arg3: memref<16x512xf32, #tpu.memory_space<vmem>>, %arg4: memref<16x512xf32, #tpu.memory_space<vmem>>, %arg5: memref<16x512xf32, #tpu.memory_space<vmem>>) attributes {dimension_semantics = [#tpu.dimension_semantics<parallel>], iteration_bounds = array<i64: 1>, scalar_prefetch = 0 : i64, scratch_operands = 0 : i64, tpu.core_type = #tpu.core_type<tc>, window_params = [{transform_indices = @transform_0, window_bounds = array<i64: 3>}, {transform_indices = @transform_1, window_bounds = array<i64: 16, 512>}, {transform_indices = @transform_2, window_bounds = array<i64: 16, 512>}, {transform_indices = @transform_3, window_bounds = array<i64: 16, 512>}, {transform_indices = @transform_4, window_bounds = array<i64: 16, 512>}]} {
    %c0 = arith.constant 0 : index
    %0 = memref.load %arg1[%c0] : memref<3xf32, #tpu.memory_space<smem>>
    %c1 = arith.constant 1 : index
    %1 = memref.load %arg1[%c1] : memref<3xf32, #tpu.memory_space<smem>>
    %c2 = arith.constant 2 : index
    %2 = memref.load %arg1[%c2] : memref<3xf32, #tpu.memory_space<smem>>
    %c0_0 = arith.constant 0 : index
    %c0_1 = arith.constant 0 : index
    %3 = vector.load %arg2[%c0_0, %c0_1] : memref<16x512xf32, #tpu.memory_space<vmem>>, vector<16x512xf32>
    %c0_2 = arith.constant 0 : index
    %c0_3 = arith.constant 0 : index
    %4 = vector.load %arg3[%c0_2, %c0_3] : memref<16x512xf32, #tpu.memory_space<vmem>>, vector<16x512xf32>
    %c0_4 = arith.constant 0 : index
    %c0_5 = arith.constant 0 : index
    %5 = vector.load %arg4[%c0_4, %c0_5] : memref<16x512xf32, #tpu.memory_space<vmem>>, vector<16x512xf32>
    %cst = arith.constant 0.000000e+00 : f32
    %6 = vector.broadcast %cst : f32 to vector<16x512xf32>
    %7 = arith.subf %6, %3 : vector<16x512xf32>
    %cst_6 = arith.constant 5.000000e-01 : f32
    %8 = vector.broadcast %cst_6 : f32 to vector<16x512xf32>
    %9 = arith.mulf %7, %8 : vector<16x512xf32>
    %cst_7 = arith.constant 5.000000e-01 : f32
    %10 = vector.broadcast %cst_7 : f32 to vector<16x512xf32>
    %11 = arith.addf %9, %10 : vector<16x512xf32>
    %cst_8 = arith.constant 0.000000e+00 : f32
    %12 = vector.broadcast %cst_8 : f32 to vector<16x512xf32>
    %13 = arith.maximumf %11, %12 : vector<16x512xf32>
    %14 = vector.broadcast %2 : f32 to vector<16x512xf32>
    %15 = arith.mulf %13, %14 : vector<16x512xf32>
    %cst_9 = arith.constant 0.000000e+00 : f32
    %16 = vector.broadcast %cst_9 : f32 to vector<16x512xf32>
    %17 = arith.subf %16, %3 : vector<16x512xf32>
    %cst_10 = arith.constant 0.000000e+00 : f32
    %18 = vector.broadcast %cst_10 : f32 to vector<16x512xf32>
    %19 = arith.maximumf %17, %18 : vector<16x512xf32>
    %20 = vector.broadcast %1 : f32 to vector<16x512xf32>
    %21 = arith.mulf %19, %20 : vector<16x512xf32>
    %22 = arith.addf %15, %21 : vector<16x512xf32>
    %cst_11 = arith.constant 0.000000e+00 : f32
    %23 = vector.broadcast %cst_11 : f32 to vector<16x512xf32>
    %24 = arith.subf %23, %22 : vector<16x512xf32>
    %25 = arith.mulf %24, %5 : vector<16x512xf32>
    %cst_12 = arith.constant 5.000000e-01 : f32
    %26 = vector.broadcast %cst_12 : f32 to vector<16x512xf32>
    %27 = arith.mulf %25, %26 : vector<16x512xf32>
    %28 = arith.subf %4, %27 : vector<16x512xf32>
    %29 = vector.broadcast %0 : f32 to vector<16x512xf32>
    %30 = arith.mulf %28, %29 : vector<16x512xf32>
    %31 = arith.negf %30 : vector<16x512xf32>
    %32 = math.exp %31 : vector<16x512xf32>
    %cst_13 = arith.constant 1.000000e+00 : f32
    %33 = vector.broadcast %cst_13 : f32 to vector<16x512xf32>
    %34 = arith.addf %33, %32 : vector<16x512xf32>
    %35 = arith.divf %33, %34 : vector<16x512xf32>
    %36 = arith.addf %4, %27 : vector<16x512xf32>
    %37 = vector.broadcast %0 : f32 to vector<16x512xf32>
    %38 = arith.mulf %36, %37 : vector<16x512xf32>
    %39 = arith.negf %38 : vector<16x512xf32>
    %40 = math.exp %39 : vector<16x512xf32>
    %cst_14 = arith.constant 1.000000e+00 : f32
    %41 = vector.broadcast %cst_14 : f32 to vector<16x512xf32>
    %42 = arith.addf %41, %40 : vector<16x512xf32>
    %43 = arith.divf %41, %42 : vector<16x512xf32>
    %44 = arith.subf %35, %43 : vector<16x512xf32>
    %cst_15 = arith.constant 9.99999974E-6 : f32
    %45 = vector.broadcast %cst_15 : f32 to vector<16x512xf32>
    %46 = arith.addf %44, %45 : vector<16x512xf32>
    %cst_16 = arith.constant 9.99999974E-6 : f32
    %47 = vector.broadcast %cst_16 : f32 to vector<16x512xf32>
    %48 = arith.addf %35, %47 : vector<16x512xf32>
    %49 = arith.divf %46, %48 : vector<16x512xf32>
    %cst_17 = arith.constant 0.000000e+00 : f32
    %cst_18 = arith.constant 1.000000e+00 : f32
    %50 = vector.broadcast %cst_17 : f32 to vector<16x512xf32>
    %51 = arith.maximumf %50, %49 : vector<16x512xf32>
    %52 = vector.broadcast %cst_18 : f32 to vector<16x512xf32>
    %53 = arith.minimumf %52, %51 : vector<16x512xf32>
    %c0_19 = arith.constant 0 : index
    %c0_20 = arith.constant 0 : index
    %54 = vector.load %arg5[%c0_19, %c0_20] : memref<16x512xf32, #tpu.memory_space<vmem>>, vector<16x512xf32>
    tpu.vector_store %arg5[%c0_19, %c0_20], %53 {strides = array<i32>} : memref<16x512xf32, #tpu.memory_space<vmem>>, vector<16x512xf32>,
    return
  }
  func.func @transform_0(%arg0: i32) -> i32 {
    %c0_i32 = arith.constant 0 : i32
    %c0_i32_0 = arith.constant 0 : i32
    return %c0_i32 : i32
  }
  func.func @transform_1(%arg0: i32) -> (i32, i32) {
    %c0_i32 = arith.constant 0 : i32
    %c0_i32_0 = arith.constant 0 : i32
    return %arg0, %c0_i32 : i32, i32
  }
  func.func @transform_2(%arg0: i32) -> (i32, i32) {
    %c0_i32 = arith.constant 0 : i32
    %c0_i32_0 = arith.constant 0 : i32
    return %arg0, %c0_i32 : i32, i32
  }
  func.func @transform_3(%arg0: i32) -> (i32, i32) {
    %c0_i32 = arith.constant 0 : i32
    %c0_i32_0 = arith.constant 0 : i32
    return %arg0, %c0_i32 : i32, i32
  }
  func.func @transform_4(%arg0: i32) -> (i32, i32) {
    %c0_i32 = arith.constant 0 : i32
    %c0_i32_0 = arith.constant 0 : i32
    return %arg0, %c0_i32 : i32, i32
  }
}

</mosaic_0001>

<llo_original>
// kernel: tpu_custom_call.1
$region0: #{tpu_custom_call.1}
  #allocation0 [shape = 'u32[]', space=smem, size = 0x4, offset = 0x4, fixed_abs, tag = 'smem constant byte address 0x4 - core index']
  #allocation1 [shape = 'u32[72,128]{1,0:T(1,128)}', space=vmem, size = 0x9000, scoped, tag = 'internal scratch']
  %s0 = inlined_call_operand.hbm [shape: f32[3], index: 0, kind: input, shape index: {}]
  %s1 = inlined_call_operand.hbm [shape: f32[16,512], index: 1, kind: input, shape index: {}]
  %s2 = inlined_call_operand.hbm [shape: f32[16,512], index: 2, kind: input, shape index: {}]
  %s3 = inlined_call_operand.hbm [shape: f32[16,512], index: 3, kind: input, shape index: {}]
  %s4 = inlined_call_operand.hbm [shape: f32[16,512], index: 4, kind: output, shape index: {}]
  %s5 = sld [smem:[#allocation0]]
  $region42: #{tpu_custom_call.1} parent=0
    _
  %s7 = ssub.s32 1, %s5
  %s8 = scalar_select 0, %s7, %s5
  $region1: #{tpu_custom_call.1} parent=0
    #allocation2 [shape = 'u8[512]{0}', space=smem, size = 0x200, scoped, tag = 'input window, operand 0, single buffered']
    #allocation3 [shape = 's32[1]{0}', space=sflag, size = 0x4, scoped, tag = 'scoped memory for tpu_custom_call.1']
    #allocation4 [shape = 's32[1]{0}', space=sflag, size = 0x4, scoped, tag = 'scoped memory for tpu_custom_call.1']
    #allocation5 [shape = 's32[1]{0}', space=sflag, size = 0x4, scoped, tag = 'scoped memory for tpu_custom_call.1']
    #allocation6 [shape = 'u8[32768]{0}', space=vmem, size = 0x8000, scoped, tag = 'input window, operand 1, single buffered']
    #allocation7 [shape = 'u8[32768]{0}', space=vmem, size = 0x8000, scoped, tag = 'input window, operand 2, single buffered']
    #allocation8 [shape = 's32[1]{0}', space=sflag, size = 0x4, scoped, tag = 'scoped memory for tpu_custom_call.1']
    #allocation9 [shape = 'u8[32768]{0}', space=vmem, size = 0x8000, scoped, tag = 'input window, operand 3, single buffered']
    #allocation10 [shape = 'u8[32768]{0}', space=vmem, size = 0x8000, scoped, tag = 'output window, operand 0, single buffered']
    %9 = vsyncpa [#allocation5], 0
    %10 = vsyncpa [#allocation3], 0
    %11 = vsyncpa [#allocation8], 0
    %12 = vsyncpa [#allocation4], 0
    // Predicated region
    $region2: #{tpu_custom_call.1} parent=1 // pred_check
      _
    $region3: #{tpu_custom_call.1} parent=1 // pred_check_branch
      %14 = sbr.rel (0) target = $region5
    $region4: #{tpu_custom_call.1} parent=1 // pred_region
      %16 = vsyncadd [#allocation5], 0
      %s18 = sshll.u32 %s0, 4
      %s19 = int_to_ptr.hbm [resolvable:$true] %s18
      %21 = dma.hbm_to_smem %s19, 16, [#allocation2], [#allocation5]
    $region5: #{tpu_custom_call.1} parent=1 // pred_fallthru
      _
    // Predicated region
    $region6: #{tpu_custom_call.1} parent=1 // pred_check
      _
    $region7: #{tpu_custom_call.1} parent=1 // pred_check_branch
      %23 = sbr.rel (0) target = $region9
    $region8: #{tpu_custom_call.1} parent=1 // pred_region
      %25 = vsyncadd [#allocation3], 0
      %s26 = sshll.u32 %s1, 4
      %s27 = int_to_ptr.hbm [resolvable:$true] %s26
      %s28 = sshll.u32 [#allocation6], 4
      %s29 = int_to_ptr.vmem [resolvable:$true] %s28
      %34 = dma.hbm_to_vmem [thread:$0]  %s27, 1024, %s29, [#allocation3], 512, 512, 32
    $region9: #{tpu_custom_call.1} parent=1 // pred_fallthru
      _
    // Predicated region
    $region10: #{tpu_custom_call.1} parent=1 // pred_check
      _
    $region11: #{tpu_custom_call.1} parent=1 // pred_check_branch
      %36 = sbr.rel (0) target = $region13
    $region12: #{tpu_custom_call.1} parent=1 // pred_region
      %38 = vsyncadd [#allocation8], 0
      %s39 = sshll.u32 %s2, 4
      %s40 = int_to_ptr.hbm [resolvable:$true] %s39
      %s41 = sshll.u32 [#allocation7], 4
      %s42 = int_to_ptr.vmem [resolvable:$true] %s41
      %47 = dma.hbm_to_vmem [thread:$0]  %s40, 1024, %s42, [#allocation8], 512, 512, 32
    $region13: #{tpu_custom_call.1} parent=1 // pred_fallthru
      _
    // Predicated region
    $region14: #{tpu_custom_call.1} parent=1 // pred_check
      _
    $region15: #{tpu_custom_call.1} parent=1 // pred_check_branch
      %49 = sbr.rel (0) target = $region17
    $region16: #{tpu_custom_call.1} parent=1 // pred_region
      %51 = vsyncadd [#allocation8], 0
      %s52 = sshll.u32 %s3, 4
      %s53 = int_to_ptr.hbm [resolvable:$true] %s52
      %s54 = sshll.u32 [#allocation9], 4
      %s55 = int_to_ptr.vmem [resolvable:$true] %s54
      %60 = dma.hbm_to_vmem [thread:$0]  %s53, 1024, %s55, [#allocation8], 512, 512, 32
    $region17: #{tpu_custom_call.1} parent=1 // pred_fallthru
      _
    // Predicated region
    $region18: #{tpu_custom_call.1} parent=1 // pred_check
      _
    $region19: #{tpu_custom_call.1} parent=1 // pred_check_branch
      %62 = sbr.rel (0) target = $region21
    $region20: #{tpu_custom_call.1} parent=1 // pred_region
      %64 = dma.done [#allocation5], 16
    $region21: #{tpu_custom_call.1} parent=1 // pred_fallthru
      _
    // Predicated region
    $region22: #{tpu_custom_call.1} parent=1 // pred_check
      _
    $region23: #{tpu_custom_call.1} parent=1 // pred_check_branch
      %66 = sbr.rel (0) target = $region25
    $region24: #{tpu_custom_call.1} parent=1 // pred_region
      %68 = dma.done [#allocation3], 1024
    $region25: #{tpu_custom_call.1} parent=1 // pred_fallthru
      _
    // Predicated region
    $region26: #{tpu_custom_call.1} parent=1 // pred_check
      _
    $region27: #{tpu_custom_call.1} parent=1 // pred_check_branch
      %70 = sbr.rel (0) target = $region29
    $region28: #{tpu_custom_call.1} parent=1 // pred_region
      %72 = dma.done [#allocation8], 1024
    $region29: #{tpu_custom_call.1} parent=1 // pred_fallthru
      _
    // Predicated region
    $region30: #{tpu_custom_call.1} parent=1 // pred_check
      _
    $region31: #{tpu_custom_call.1} parent=1 // pred_check_branch
      %74 = sbr.rel (0) target = $region33
    $region32: #{tpu_custom_call.1} parent=1 // pred_region
      %76 = dma.done [#allocation8], 1024
    $region33: #{tpu_custom_call.1} parent=1 // pred_fallthru
      _
    %77 = sfence
    %s78 = sld [smem:[#allocation2]]
    %s79 = sld [smem:[#allocation2 + $0x1]]
    %s80 = sld [smem:[#allocation2 + $0x2]]
    %v81 = vld [vmem:[#allocation6] sm:$0xff]
    %v82 = vld [vmem:[#allocation6 + $0x8] sm:$0xff]
    %v83 = vld [vmem:[#allocation6 + $0x10] sm:$0xff]
    %v84 = vld [vmem:[#allocation6 + $0x18] sm:$0xff]
    %v85 = vld [vmem:[#allocation6 + $0x20] sm:$0xff]
    %v86 = vld [vmem:[#allocation6 + $0x28] sm:$0xff]
    %v87 = vld [vmem:[#allocation6 + $0x30] sm:$0xff]
    %v88 = vld [vmem:[#allocation6 + $0x38] sm:$0xff]
    %v89 = vld [vmem:[#allocation7] sm:$0xff]
    %v90 = vld [vmem:[#allocation7 + $0x8] sm:$0xff]
    %v91 = vld [vmem:[#allocation7 + $0x10] sm:$0xff]
    %v92 = vld [vmem:[#allocation7 + $0x18] sm:$0xff]
    %v93 = vld [vmem:[#allocation7 + $0x20] sm:$0xff]
    %v94 = vld [vmem:[#allocation7 + $0x28] sm:$0xff]
    %v95 = vld [vmem:[#allocation7 + $0x30] sm:$0xff]
    %v96 = vld [vmem:[#allocation7 + $0x38] sm:$0xff]
    %v97 = vld [vmem:[#allocation9] sm:$0xff]
    %v98 = vld [vmem:[#allocation9 + $0x8] sm:$0xff]
    %v99 = vld [vmem:[#allocation9 + $0x10] sm:$0xff]
    %v100 = vld [vmem:[#allocation9 + $0x18] sm:$0xff]
    %v101 = vld [vmem:[#allocation9 + $0x20] sm:$0xff]
    %v102 = vld [vmem:[#allocation9 + $0x28] sm:$0xff]
    %v103 = vld [vmem:[#allocation9 + $0x30] sm:$0xff]
    %v104 = vld [vmem:[#allocation9 + $0x38] sm:$0xff]
    %v105 = vsub.f32 0.0, %v81
    %v106 = vsub.f32 0.0, %v82
    %v107 = vsub.f32 0.0, %v83
    %v108 = vsub.f32 0.0, %v84
    %v109 = vsub.f32 0.0, %v85
    %v110 = vsub.f32 0.0, %v86
    %v111 = vsub.f32 0.0, %v87
    %v112 = vsub.f32 0.0, %v88
    %v113 = vmul.f32 %v105, 0.5
    %v114 = vmul.f32 %v106, 0.5
    %v115 = vmul.f32 %v107, 0.5
    %v116 = vmul.f32 %v108, 0.5
    %v117 = vmul.f32 %v109, 0.5
    %v118 = vmul.f32 %v110, 0.5
    %v119 = vmul.f32 %v111, 0.5
    %v120 = vmul.f32 %v112, 0.5
    %v121 = vadd.f32 %v113, 0.5
    %v122 = vadd.f32 %v114, 0.5
    %v123 = vadd.f32 %v115, 0.5
    %v124 = vadd.f32 %v116, 0.5
    %v125 = vadd.f32 %v117, 0.5
    %v126 = vadd.f32 %v118, 0.5
    %v127 = vadd.f32 %v119, 0.5
    %v128 = vadd.f32 %v120, 0.5
    %v129 = vmax.f32 %v121, 0.0
    %v130 = vmax.f32 %v122, 0.0
    %v131 = vmax.f32 %v123, 0.0
    %v132 = vmax.f32 %v124, 0.0
    %v133 = vmax.f32 %v125, 0.0
    %v134 = vmax.f32 %v126, 0.0
    %v135 = vmax.f32 %v127, 0.0
    %v136 = vmax.f32 %v128, 0.0
    %v137 = vstv %s80
    %v138 = vmul.f32 %v129, %v137
    %v139 = vmul.f32 %v130, %v137
    %v140 = vmul.f32 %v131, %v137
    %v141 = vmul.f32 %v132, %v137
    %v142 = vmul.f32 %v133, %v137
    %v143 = vmul.f32 %v134, %v137
    %v144 = vmul.f32 %v135, %v137
    %v145 = vmul.f32 %v136, %v137
    %v146 = vmax.f32 %v105, 0.0
    %v147 = vmax.f32 %v106, 0.0
    %v148 = vmax.f32 %v107, 0.0
    %v149 = vmax.f32 %v108, 0.0
    %v150 = vmax.f32 %v109, 0.0
    %v151 = vmax.f32 %v110, 0.0
    %v152 = vmax.f32 %v111, 0.0
    %v153 = vmax.f32 %v112, 0.0
    %v154 = vstv %s79
    %v155 = vmul.f32 %v146, %v154
    %v156 = vmul.f32 %v147, %v154
    %v157 = vmul.f32 %v148, %v154
    %v158 = vmul.f32 %v149, %v154
    %v159 = vmul.f32 %v150, %v154
    %v160 = vmul.f32 %v151, %v154
    %v161 = vmul.f32 %v152, %v154
    %v162 = vmul.f32 %v153, %v154
    %v163 = vadd.f32 %v138, %v155
    %v164 = vadd.f32 %v139, %v156
    %v165 = vadd.f32 %v140, %v157
    %v166 = vadd.f32 %v141, %v158
    %v167 = vadd.f32 %v142, %v159
    %v168 = vadd.f32 %v143, %v160
    %v169 = vadd.f32 %v144, %v161
    %v170 = vadd.f32 %v145, %v162
    %v171 = vsub.f32 0.0, %v163
    %v172 = vsub.f32 0.0, %v164
    %v173 = vsub.f32 0.0, %v165
    %v174 = vsub.f32 0.0, %v166
    %v175 = vsub.f32 0.0, %v167
    %v176 = vsub.f32 0.0, %v168
    %v177 = vsub.f32 0.0, %v169
    %v178 = vsub.f32 0.0, %v170
    %v179 = vmul.f32 %v171, %v97
    %v180 = vmul.f32 %v172, %v98
    %v181 = vmul.f32 %v173, %v99
    %v182 = vmul.f32 %v174, %v100
    %v183 = vmul.f32 %v175, %v101
    %v184 = vmul.f32 %v176, %v102
    %v185 = vmul.f32 %v177, %v103
    %v186 = vmul.f32 %v178, %v104
    %v187 = vmul.f32 %v179, 0.5
    %v188 = vmul.f32 %v180, 0.5
    %v189 = vmul.f32 %v181, 0.5
    %v190 = vmul.f32 %v182, 0.5
    %v191 = vmul.f32 %v183, 0.5
    %v192 = vmul.f32 %v184, 0.5
    %v193 = vmul.f32 %v185, 0.5
    %v194 = vmul.f32 %v186, 0.5
    %v195 = vsub.f32 %v89, %v187
    %v196 = vsub.f32 %v90, %v188
    %v197 = vsub.f32 %v91, %v189
    %v198 = vsub.f32 %v92, %v190
    %v199 = vsub.f32 %v93, %v191
    %v200 = vsub.f32 %v94, %v192
    %v201 = vsub.f32 %v95, %v193
    %v202 = vsub.f32 %v96, %v194
    %v203 = vstv %s78
    %v204 = vmul.f32 %v195, %v203
    %v205 = vmul.f32 %v196, %v203
    %v206 = vmul.f32 %v197, %v203
    %v207 = vmul.f32 %v198, %v203
    %v208 = vmul.f32 %v199, %v203
    %v209 = vmul.f32 %v200, %v203
    %v210 = vmul.f32 %v201, %v203
    %v211 = vmul.f32 %v202, %v203
    %v212 = vxor.u32 %v204, 2147483648
    %v213 = vxor.u32 %v205, 2147483648
    %v214 = vxor.u32 %v206, 2147483648
    %v215 = vxor.u32 %v207, 2147483648
    %v216 = vxor.u32 %v208, 2147483648
    %v217 = vxor.u32 %v209, 2147483648
    %v218 = vxor.u32 %v210, 2147483648
    %v219 = vxor.u32 %v211, 2147483648
    %v220 = vmul.f32 %v212, 1.442695
    %v221 = vpow.pop %v220
    %v222 = vmul.f32 %v213, 1.442695
    %v223 = vpow.pop %v222
    %v224 = vmul.f32 %v214, 1.442695
    %v225 = vpow.pop %v224
    %v226 = vmul.f32 %v215, 1.442695
    %v227 = vpow.pop %v226
    %v228 = vmul.f32 %v216, 1.442695
    %v229 = vpow.pop %v228
    %v230 = vmul.f32 %v217, 1.442695
    %v231 = vpow.pop %v230
    %v232 = vmul.f32 %v218, 1.442695
    %v233 = vpow.pop %v232
    %v234 = vmul.f32 %v219, 1.442695
    %v235 = vpow.pop %v234
    %v236 = vadd.f32 %v221, 1.0
    %v237 = vadd.f32 %v223, 1.0
    %v238 = vadd.f32 %v225, 1.0
    %v239 = vadd.f32 %v227, 1.0
    %v240 = vadd.f32 %v229, 1.0
    %v241 = vadd.f32 %v231, 1.0
    %v242 = vadd.f32 %v233, 1.0
    %v243 = vadd.f32 %v235, 1.0
    %v244 = vrcp.pop %v236
    %v245 = vmul.f32 %v236, %v244
    %v246 = vsub.f32 1.0, %v245
    %v247 = vmul.f32 %v244, %v246
    %v248 = vadd.f32 %v244, %v247
    %vm249 = vweird.f32 %v236
    %vm250 = vweird.f32 %v244
    %vm251 = vmor %vm249, %vm250
    %v252 = vsel %vm251, %v244, %v248
    %v253 = vand.u32 2147483647, %v236
    %vm254 = vcmp.eq.f32.partialorder %v253, 8.507059e+37
    %v255 = vand.u32 %v236, 2147483648
    %v256 = vor.u32 1.1754944e-38, %v255
    %v257 = vsel %vm254, %v256, %v252
    %v258 = vmul.f32 1.0, %v257
    %v259 = vrcp.pop %v237
    %v260 = vmul.f32 %v237, %v259
    %v261 = vsub.f32 1.0, %v260
    %v262 = vmul.f32 %v259, %v261
    %v263 = vadd.f32 %v259, %v262
    %vm264 = vweird.f32 %v237
    %vm265 = vweird.f32 %v259
    %vm266 = vmor %vm264, %vm265
    %v267 = vsel %vm266, %v259, %v263
    %v268 = vand.u32 2147483647, %v237
    %vm269 = vcmp.eq.f32.partialorder %v268, 8.507059e+37
    %v270 = vand.u32 %v237, 2147483648
    %v271 = vor.u32 1.1754944e-38, %v270
    %v272 = vsel %vm269, %v271, %v267
    %v273 = vmul.f32 1.0, %v272
    %v274 = vrcp.pop %v238
    %v275 = vmul.f32 %v238, %v274
    %v276 = vsub.f32 1.0, %v275
    %v277 = vmul.f32 %v274, %v276
    %v278 = vadd.f32 %v274, %v277
    %vm279 = vweird.f32 %v238
    %vm280 = vweird.f32 %v274
    %vm281 = vmor %vm279, %vm280
    %v282 = vsel %vm281, %v274, %v278
    %v283 = vand.u32 2147483647, %v238
    %vm284 = vcmp.eq.f32.partialorder %v283, 8.507059e+37
    %v285 = vand.u32 %v238, 2147483648
    %v286 = vor.u32 1.1754944e-38, %v285
    %v287 = vsel %vm284, %v286, %v282
    %v288 = vmul.f32 1.0, %v287
    %v289 = vrcp.pop %v239
    %v290 = vmul.f32 %v239, %v289
    %v291 = vsub.f32 1.0, %v290
    %v292 = vmul.f32 %v289, %v291
    %v293 = vadd.f32 %v289, %v292
    %vm294 = vweird.f32 %v239
    %vm295 = vweird.f32 %v289
    %vm296 = vmor %vm294, %vm295
    %v297 = vsel %vm296, %v289, %v293
    %v298 = vand.u32 2147483647, %v239
    %vm299 = vcmp.eq.f32.partialorder %v298, 8.507059e+37
    %v300 = vand.u32 %v239, 2147483648
    %v301 = vor.u32 1.1754944e-38, %v300
    %v302 = vsel %vm299, %v301, %v297
    %v303 = vmul.f32 1.0, %v302
    %v304 = vrcp.pop %v240
    %v305 = vmul.f32 %v240, %v304
    %v306 = vsub.f32 1.0, %v305
    %v307 = vmul.f32 %v304, %v306
    %v308 = vadd.f32 %v304, %v307
    %vm309 = vweird.f32 %v240
    %vm310 = vweird.f32 %v304
    %vm311 = vmor %vm309, %vm310
    %v312 = vsel %vm311, %v304, %v308
    %v313 = vand.u32 2147483647, %v240
    %vm314 = vcmp.eq.f32.partialorder %v313, 8.507059e+37
    %v315 = vand.u32 %v240, 2147483648
    %v316 = vor.u32 1.1754944e-38, %v315
    %v317 = vsel %vm314, %v316, %v312
    %v318 = vmul.f32 1.0, %v317
    %v319 = vrcp.pop %v241
    %v320 = vmul.f32 %v241, %v319
    %v321 = vsub.f32 1.0, %v320
    %v322 = vmul.f32 %v319, %v321
    %v323 = vadd.f32 %v319, %v322
    %vm324 = vweird.f32 %v241
    %vm325 = vweird.f32 %v319
    %vm326 = vmor %vm324, %vm325
    %v327 = vsel %vm326, %v319, %v323
    %v328 = vand.u32 2147483647, %v241
    %vm329 = vcmp.eq.f32.partialorder %v328, 8.507059e+37
    %v330 = vand.u32 %v241, 2147483648
    %v331 = vor.u32 1.1754944e-38, %v330
    %v332 = vsel %vm329, %v331, %v327
    %v333 = vmul.f32 1.0, %v332
    %v334 = vrcp.pop %v242
    %v335 = vmul.f32 %v242, %v334
    %v336 = vsub.f32 1.0, %v335
    %v337 = vmul.f32 %v334, %v336
    %v338 = vadd.f32 %v334, %v337
    %vm339 = vweird.f32 %v242
    %vm340 = vweird.f32 %v334
    %vm341 = vmor %vm339, %vm340
    %v342 = vsel %vm341, %v334, %v338
    %v343 = vand.u32 2147483647, %v242
    %vm344 = vcmp.eq.f32.partialorder %v343, 8.507059e+37
    %v345 = vand.u32 %v242, 2147483648
    %v346 = vor.u32 1.1754944e-38, %v345
    %v347 = vsel %vm344, %v346, %v342
    %v348 = vmul.f32 1.0, %v347
    %v349 = vrcp.pop %v243
    %v350 = vmul.f32 %v243, %v349
    %v351 = vsub.f32 1.0, %v350
    %v352 = vmul.f32 %v349, %v351
    %v353 = vadd.f32 %v349, %v352
    %vm354 = vweird.f32 %v243
    %vm355 = vweird.f32 %v349
    %vm356 = vmor %vm354, %vm355
    %v357 = vsel %vm356, %v349, %v353
    %v358 = vand.u32 2147483647, %v243
    %vm359 = vcmp.eq.f32.partialorder %v358, 8.507059e+37
    %v360 = vand.u32 %v243, 2147483648
    %v361 = vor.u32 1.1754944e-38, %v360
    %v362 = vsel %vm359, %v361, %v357
    %v363 = vmul.f32 1.0, %v362
    %v364 = vadd.f32 %v89, %v187
    %v365 = vadd.f32 %v90, %v188
    %v366 = vadd.f32 %v91, %v189
    %v367 = vadd.f32 %v92, %v190
    %v368 = vadd.f32 %v93, %v191
    %v369 = vadd.f32 %v94, %v192
    %v370 = vadd.f32 %v95, %v193
    %v371 = vadd.f32 %v96, %v194
    %v372 = vmul.f32 %v364, %v203
    %v373 = vmul.f32 %v365, %v203
    %v374 = vmul.f32 %v366, %v203
    %v375 = vmul.f32 %v367, %v203
    %v376 = vmul.f32 %v368, %v203
    %v377 = vmul.f32 %v369, %v203
    %v378 = vmul.f32 %v370, %v203
    %v379 = vmul.f32 %v371, %v203
    %v380 = vxor.u32 %v372, 2147483648
    %v381 = vxor.u32 %v373, 2147483648
    %v382 = vxor.u32 %v374, 2147483648
    %v383 = vxor.u32 %v375, 2147483648
    %v384 = vxor.u32 %v376, 2147483648
    %v385 = vxor.u32 %v377, 2147483648
    %v386 = vxor.u32 %v378, 2147483648
    %v387 = vxor.u32 %v379, 2147483648
    %v388 = vmul.f32 %v380, 1.442695
    %v389 = vpow.pop %v388
    %v390 = vmul.f32 %v381, 1.442695
    %v391 = vpow.pop %v390
    %v392 = vmul.f32 %v382, 1.442695
    %v393 = vpow.pop %v392
    %v394 = vmul.f32 %v383, 1.442695
    %v395 = vpow.pop %v394
    %v396 = vmul.f32 %v384, 1.442695
    %v397 = vpow.pop %v396
    %v398 = vmul.f32 %v385, 1.442695
    %v399 = vpow.pop %v398
    %v400 = vmul.f32 %v386, 1.442695
    %v401 = vpow.pop %v400
    %v402 = vmul.f32 %v387, 1.442695
    %v403 = vpow.pop %v402
    %v404 = vadd.f32 %v389, 1.0
    %v405 = vadd.f32 %v391, 1.0
    %v406 = vadd.f32 %v393, 1.0
    %v407 = vadd.f32 %v395, 1.0
    %v408 = vadd.f32 %v397, 1.0
    %v409 = vadd.f32 %v399, 1.0
    %v410 = vadd.f32 %v401, 1.0
    %v411 = vadd.f32 %v403, 1.0
    %v412 = vrcp.pop %v404
    %v413 = vmul.f32 %v404, %v412
    %v414 = vsub.f32 1.0, %v413
    %v415 = vmul.f32 %v412, %v414
    %v416 = vadd.f32 %v412, %v415
    %vm417 = vweird.f32 %v404
    %vm418 = vweird.f32 %v412
    %vm419 = vmor %vm417, %vm418
    %v420 = vsel %vm419, %v412, %v416
    %v421 = vand.u32 2147483647, %v404
    %vm422 = vcmp.eq.f32.partialorder %v421, 8.507059e+37
    %v423 = vand.u32 %v404, 2147483648
    %v424 = vor.u32 1.1754944e-38, %v423
    %v425 = vsel %vm422, %v424, %v420
    %v426 = vmul.f32 1.0, %v425
    %v427 = vrcp.pop %v405
    %v428 = vmul.f32 %v405, %v427
    %v429 = vsub.f32 1.0, %v428
    %v430 = vmul.f32 %v427, %v429
    %v431 = vadd.f32 %v427, %v430
    %vm432 = vweird.f32 %v405
    %vm433 = vweird.f32 %v427
    %vm434 = vmor %vm432, %vm433
    %v435 = vsel %vm434, %v427, %v431
    %v436 = vand.u32 2147483647, %v405
    %vm437 = vcmp.eq.f32.partialorder %v436, 8.507059e+37
    %v438 = vand.u32 %v405, 2147483648
    %v439 = vor.u32 1.1754944e-38, %v438
    %v440 = vsel %vm437, %v439, %v435
    %v441 = vmul.f32 1.0, %v440
    %v442 = vrcp.pop %v406
    %v443 = vmul.f32 %v406, %v442
    %v444 = vsub.f32 1.0, %v443
    %v445 = vmul.f32 %v442, %v444
    %v446 = vadd.f32 %v442, %v445
    %vm447 = vweird.f32 %v406
    %vm448 = vweird.f32 %v442
    %vm449 = vmor %vm447, %vm448
    %v450 = vsel %vm449, %v442, %v446
    %v451 = vand.u32 2147483647, %v406
    %vm452 = vcmp.eq.f32.partialorder %v451, 8.507059e+37
    %v453 = vand.u32 %v406, 2147483648
    %v454 = vor.u32 1.1754944e-38, %v453
    %v455 = vsel %vm452, %v454, %v450
    %v456 = vmul.f32 1.0, %v455
    %v457 = vrcp.pop %v407
    %v458 = vmul.f32 %v407, %v457
    %v459 = vsub.f32 1.0, %v458
    %v460 = vmul.f32 %v457, %v459
    %v461 = vadd.f32 %v457, %v460
    %vm462 = vweird.f32 %v407
    %vm463 = vweird.f32 %v457
    %vm464 = vmor %vm462, %vm463
    %v465 = vsel %vm464, %v457, %v461
    %v466 = vand.u32 2147483647, %v407
    %vm467 = vcmp.eq.f32.partialorder %v466, 8.507059e+37
    %v468 = vand.u32 %v407, 2147483648
    %v469 = vor.u32 1.1754944e-38, %v468
    %v470 = vsel %vm467, %v469, %v465
    %v471 = vmul.f32 1.0, %v470
    %v472 = vrcp.pop %v408
    %v473 = vmul.f32 %v408, %v472
    %v474 = vsub.f32 1.0, %v473
    %v475 = vmul.f32 %v472, %v474
    %v476 = vadd.f32 %v472, %v475
    %vm477 = vweird.f32 %v408
    %vm478 = vweird.f32 %v472
    %vm479 = vmor %vm477, %vm478
    %v480 = vsel %vm479, %v472, %v476
    %v481 = vand.u32 2147483647, %v408
    %vm482 = vcmp.eq.f32.partialorder %v481, 8.507059e+37
    %v483 = vand.u32 %v408, 2147483648
    %v484 = vor.u32 1.1754944e-38, %v483
    %v485 = vsel %vm482, %v484, %v480
    %v486 = vmul.f32 1.0, %v485
    %v487 = vrcp.pop %v409
    %v488 = vmul.f32 %v409, %v487
    %v489 = vsub.f32 1.0, %v488
    %v490 = vmul.f32 %v487, %v489
    %v491 = vadd.f32 %v487, %v490
    %vm492 = vweird.f32 %v409
    %vm493 = vweird.f32 %v487
    %vm494 = vmor %vm492, %vm493
    %v495 = vsel %vm494, %v487, %v491
    %v496 = vand.u32 2147483647, %v409
    %vm497 = vcmp.eq.f32.partialorder %v496, 8.507059e+37
    %v498 = vand.u32 %v409, 2147483648
    %v499 = vor.u32 1.1754944e-38, %v498
    %v500 = vsel %vm497, %v499, %v495
    %v501 = vmul.f32 1.0, %v500
    %v502 = vrcp.pop %v410
    %v503 = vmul.f32 %v410, %v502
    %v504 = vsub.f32 1.0, %v503
    %v505 = vmul.f32 %v502, %v504
    %v506 = vadd.f32 %v502, %v505
    %vm507 = vweird.f32 %v410
    %vm508 = vweird.f32 %v502
    %vm509 = vmor %vm507, %vm508
    %v510 = vsel %vm509, %v502, %v506
    %v511 = vand.u32 2147483647, %v410
    %vm512 = vcmp.eq.f32.partialorder %v511, 8.507059e+37
    %v513 = vand.u32 %v410, 2147483648
    %v514 = vor.u32 1.1754944e-38, %v513
    %v515 = vsel %vm512, %v514, %v510
    %v516 = vmul.f32 1.0, %v515
    %v517 = vrcp.pop %v411
    %v518 = vmul.f32 %v411, %v517
    %v519 = vsub.f32 1.0, %v518
    %v520 = vmul.f32 %v517, %v519
    %v521 = vadd.f32 %v517, %v520
    %vm522 = vweird.f32 %v411
    %vm523 = vweird.f32 %v517
    %vm524 = vmor %vm522, %vm523
    %v525 = vsel %vm524, %v517, %v521
    %v526 = vand.u32 2147483647, %v411
    %vm527 = vcmp.eq.f32.partialorder %v526, 8.507059e+37
    %v528 = vand.u32 %v411, 2147483648
    %v529 = vor.u32 1.1754944e-38, %v528
    %v530 = vsel %vm527, %v529, %v525
    %v531 = vmul.f32 1.0, %v530
    %v532 = vsub.f32 %v258, %v426
    %v533 = vsub.f32 %v273, %v441
    %v534 = vsub.f32 %v288, %v456
    %v535 = vsub.f32 %v303, %v471
    %v536 = vsub.f32 %v318, %v486
    %v537 = vsub.f32 %v333, %v501
    %v538 = vsub.f32 %v348, %v516
    %v539 = vsub.f32 %v363, %v531
    %v540 = vadd.f32 %v532, 1e-05
    %v541 = vadd.f32 %v533, 1e-05
    %v542 = vadd.f32 %v534, 1e-05
    %v543 = vadd.f32 %v535, 1e-05
    %v544 = vadd.f32 %v536, 1e-05
    %v545 = vadd.f32 %v537, 1e-05
    %v546 = vadd.f32 %v538, 1e-05
    %v547 = vadd.f32 %v539, 1e-05
    %v548 = vadd.f32 %v258, 1e-05
    %v549 = vadd.f32 %v273, 1e-05
    %v550 = vadd.f32 %v288, 1e-05
    %v551 = vadd.f32 %v303, 1e-05
    %v552 = vadd.f32 %v318, 1e-05
    %v553 = vadd.f32 %v333, 1e-05
    %v554 = vadd.f32 %v348, 1e-05
    %v555 = vadd.f32 %v363, 1e-05
    %v556 = vrcp.pop %v548
    %v557 = vmul.f32 %v548, %v556
    %v558 = vsub.f32 1.0, %v557
    %v559 = vmul.f32 %v556, %v558
    %v560 = vadd.f32 %v556, %v559
    %vm561 = vweird.f32 %v548
    %vm562 = vweird.f32 %v556
    %vm563 = vmor %vm561, %vm562
    %v564 = vsel %vm563, %v556, %v560
    %v565 = vand.u32 2147483647, %v548
    %vm566 = vcmp.eq.f32.partialorder %v565, 8.507059e+37
    %v567 = vand.u32 %v548, 2147483648
    %v568 = vor.u32 1.1754944e-38, %v567
    %v569 = vsel %vm566, %v568, %v564
    %v570 = vmul.f32 %v540, %v569
    %v571 = vrcp.pop %v549
    %v572 = vmul.f32 %v549, %v571
    %v573 = vsub.f32 1.0, %v572
    %v574 = vmul.f32 %v571, %v573
    %v575 = vadd.f32 %v571, %v574
    %vm576 = vweird.f32 %v549
    %vm577 = vweird.f32 %v571
    %vm578 = vmor %vm576, %vm577
    %v579 = vsel %vm578, %v571, %v575
    %v580 = vand.u32 2147483647, %v549
    %vm581 = vcmp.eq.f32.partialorder %v580, 8.507059e+37
    %v582 = vand.u32 %v549, 2147483648
    %v583 = vor.u32 1.1754944e-38, %v582
    %v584 = vsel %vm581, %v583, %v579
    %v585 = vmul.f32 %v541, %v584
    %v586 = vrcp.pop %v550
    %v587 = vmul.f32 %v550, %v586
    %v588 = vsub.f32 1.0, %v587
    %v589 = vmul.f32 %v586, %v588
    %v590 = vadd.f32 %v586, %v589
    %vm591 = vweird.f32 %v550
    %vm592 = vweird.f32 %v586
    %vm593 = vmor %vm591, %vm592
    %v594 = vsel %vm593, %v586, %v590
    %v595 = vand.u32 2147483647, %v550
    %vm596 = vcmp.eq.f32.partialorder %v595, 8.507059e+37
    %v597 = vand.u32 %v550, 2147483648
    %v598 = vor.u32 1.1754944e-38, %v597
    %v599 = vsel %vm596, %v598, %v594
    %v600 = vmul.f32 %v542, %v599
    %v601 = vrcp.pop %v551
    %v602 = vmul.f32 %v551, %v601
    %v603 = vsub.f32 1.0, %v602
    %v604 = vmul.f32 %v601, %v603
    %v605 = vadd.f32 %v601, %v604
    %vm606 = vweird.f32 %v551
    %vm607 = vweird.f32 %v601
    %vm608 = vmor %vm606, %vm607
    %v609 = vsel %vm608, %v601, %v605
    %v610 = vand.u32 2147483647, %v551
    %vm611 = vcmp.eq.f32.partialorder %v610, 8.507059e+37
    %v612 = vand.u32 %v551, 2147483648
    %v613 = vor.u32 1.1754944e-38, %v612
    %v614 = vsel %vm611, %v613, %v609
    %v615 = vmul.f32 %v543, %v614
    %v616 = vrcp.pop %v552
    %v617 = vmul.f32 %v552, %v616
    %v618 = vsub.f32 1.0, %v617
    %v619 = vmul.f32 %v616, %v618
    %v620 = vadd.f32 %v616, %v619
    %vm621 = vweird.f32 %v552
    %vm622 = vweird.f32 %v616
    %vm623 = vmor %vm621, %vm622
    %v624 = vsel %vm623, %v616, %v620
    %v625 = vand.u32 2147483647, %v552
    %vm626 = vcmp.eq.f32.partialorder %v625, 8.507059e+37
    %v627 = vand.u32 %v552, 2147483648
    %v628 = vor.u32 1.1754944e-38, %v627
    %v629 = vsel %vm626, %v628, %v624
    %v630 = vmul.f32 %v544, %v629
    %v631 = vrcp.pop %v553
    %v632 = vmul.f32 %v553, %v631
    %v633 = vsub.f32 1.0, %v632
    %v634 = vmul.f32 %v631, %v633
    %v635 = vadd.f32 %v631, %v634
    %vm636 = vweird.f32 %v553
    %vm637 = vweird.f32 %v631
    %vm638 = vmor %vm636, %vm637
    %v639 = vsel %vm638, %v631, %v635
    %v640 = vand.u32 2147483647, %v553
    %vm641 = vcmp.eq.f32.partialorder %v640, 8.507059e+37
    %v642 = vand.u32 %v553, 2147483648
    %v643 = vor.u32 1.1754944e-38, %v642
    %v644 = vsel %vm641, %v643, %v639
    %v645 = vmul.f32 %v545, %v644
    %v646 = vrcp.pop %v554
    %v647 = vmul.f32 %v554, %v646
    %v648 = vsub.f32 1.0, %v647
    %v649 = vmul.f32 %v646, %v648
    %v650 = vadd.f32 %v646, %v649
    %vm651 = vweird.f32 %v554
    %vm652 = vweird.f32 %v646
    %vm653 = vmor %vm651, %vm652
    %v654 = vsel %vm653, %v646, %v650
    %v655 = vand.u32 2147483647, %v554
    %vm656 = vcmp.eq.f32.partialorder %v655, 8.507059e+37
    %v657 = vand.u32 %v554, 2147483648
    %v658 = vor.u32 1.1754944e-38, %v657
    %v659 = vsel %vm656, %v658, %v654
    %v660 = vmul.f32 %v546, %v659
    %v661 = vrcp.pop %v555
    %v662 = vmul.f32 %v555, %v661
    %v663 = vsub.f32 1.0, %v662
    %v664 = vmul.f32 %v661, %v663
    %v665 = vadd.f32 %v661, %v664
    %vm666 = vweird.f32 %v555
    %vm667 = vweird.f32 %v661
    %vm668 = vmor %vm666, %vm667
    %v669 = vsel %vm668, %v661, %v665
    %v670 = vand.u32 2147483647, %v555
    %vm671 = vcmp.eq.f32.partialorder %v670, 8.507059e+37
    %v672 = vand.u32 %v555, 2147483648
    %v673 = vor.u32 1.1754944e-38, %v672
    %v674 = vsel %vm671, %v673, %v669
    %v675 = vmul.f32 %v547, %v674
    %v676 = vmax.f32 %v570, 0.0
    %v677 = vmax.f32 %v585, 0.0
    %v678 = vmax.f32 %v600, 0.0
    %v679 = vmax.f32 %v615, 0.0
    %v680 = vmax.f32 %v630, 0.0
    %v681 = vmax.f32 %v645, 0.0
    %v682 = vmax.f32 %v660, 0.0
    %v683 = vmax.f32 %v675, 0.0
    %v684 = vmin.f32 %v676, 1.0
    %v685 = vmin.f32 %v677, 1.0
    %v686 = vmin.f32 %v678, 1.0
    %v687 = vmin.f32 %v679, 1.0
    %v688 = vmin.f32 %v680, 1.0
    %v689 = vmin.f32 %v681, 1.0
    %v690 = vmin.f32 %v682, 1.0
    %v691 = vmin.f32 %v683, 1.0
    %692 = vst [vmem:[#allocation10] sm:$0xff] %v684
    %693 = vst [vmem:[#allocation10 + $0x8] sm:$0xff] %v685
    %694 = vst [vmem:[#allocation10 + $0x10] sm:$0xff] %v686
    %695 = vst [vmem:[#allocation10 + $0x18] sm:$0xff] %v687
    %696 = vst [vmem:[#allocation10 + $0x20] sm:$0xff] %v688
    %697 = vst [vmem:[#allocation10 + $0x28] sm:$0xff] %v689
    %698 = vst [vmem:[#allocation10 + $0x30] sm:$0xff] %v690
    %699 = vst [vmem:[#allocation10 + $0x38] sm:$0xff] %v691
    // Predicated region
    $region34: #{tpu_custom_call.1} parent=1 // pred_check
      _
    $region35: #{tpu_custom_call.1} parent=1 // pred_check_branch
      %701 = sbr.rel (0) target = $region37
    $region36: #{tpu_custom_call.1} parent=1 // pred_region
      %703 = vsyncadd [#allocation4], 0
      %s704 = sshll.u32 [#allocation10], 4
      %s705 = int_to_ptr.vmem [resolvable:$true] %s704
      %s706 = sshll.u32 %s4, 4
      %s707 = int_to_ptr.hbm [resolvable:$true] %s706
      %712 = dma.vmem_to_hbm [thread:$0]  %s705, 1024, %s707, [#allocation4], 512, 512, 32
    $region37: #{tpu_custom_call.1} parent=1 // pred_fallthru
      _
    // Predicated region
    $region38: #{tpu_custom_call.1} parent=1 // pred_check
      _
    $region39: #{tpu_custom_call.1} parent=1 // pred_check_branch
      %714 = sbr.rel (0) target = $region41
    $region40: #{tpu_custom_call.1} parent=1 // pred_region
      %716 = dma.done [#allocation4], 1024
    $region41: #{tpu_custom_call.1} parent=1 // pred_fallthru
      _
    %717 = vsyncpa [#allocation3], 1
    %718 = vsyncpa [#allocation8], 1
    %719 = vsyncpa [#allocation4], 1
    %720 = vsyncpa [#allocation5], 1

</llo_original>
